<compile_context>
chip_gen: v6e
topology: v6e:2x2x1
jax: 0.10.0
libtpu: 0.0.40
codegen_flags: <defaults>
</compile_context>

<pallas_src>
import jax
import jax.numpy as jnp
from jax.experimental import pallas as pl
from jax.experimental.pallas import tpu as pltpu


def _debug_model_kernel(y_ref, w_ref, x_ref, b_ref, loss_ref, pred_ref):
    # scores[c, b] = (W @ x^T)[c, b] + bias[c]   -- batch on the lane axis.
    # bf16 MXU inputs, f32 accumulation (preferred_element_type).
    scores = jnp.dot(w_ref[...].astype(jnp.bfloat16),
                     x_ref[...].astype(jnp.bfloat16),
                     preferred_element_type=jnp.float32) + b_ref[...]
    C, B = scores.shape
    cls = jax.lax.broadcasted_iota(jnp.int32, (C, B), 0)   # class index per row

    # argmax over classes: first index attaining the max (matches torch.argmax).
    col_max = jnp.max(scores, axis=0, keepdims=True)       # [1, B]
    is_max = scores == col_max
    pred = jnp.min(jnp.where(is_max, cls, C), axis=0, keepdims=True)  # [1, B]
    pred_ref[...] = pred.astype(jnp.int32)                 # lane-dense store

    # Broadcast SMEM labels into a [1, B] lane vector (B is tiny and static).
    lane = jax.lax.broadcasted_iota(jnp.int32, (1, B), 1)
    y_row = jnp.zeros((1, B), jnp.int32)
    for b in range(B):
        y_row = jnp.where(lane == b, y_ref[b], y_row)

    # Mean cross-entropy with integer targets via max-shifted log-sum-exp:
    #   loss_b = logsumexp(scores[:, b]) - scores[y_b, b]
    shifted = scores - col_max
    lse = jnp.log(jnp.sum(jnp.exp(shifted), axis=0, keepdims=True)) + col_max  # [1,B]
    true_score = jnp.sum(jnp.where(cls == y_row, scores, 0.0),
                         axis=0, keepdims=True)                                # [1,B]
    per_example = lse - true_score                                             # [1,B]
    loss_ref[...] = jnp.sum(per_example, axis=1, keepdims=True) * (1.0 / B)    # [1,1]


def debug_model_forward(s_x, s_y, q_x, q_y, weight, bias):
    """Pallas equivalent of DebugModel.forward. Returns (loss, pred_y).

    weight: [num_classes, D]  (native nn.Linear layout)
    bias:   [num_classes]
    """
    del s_x, s_y  # unused by the reference forward
    B = q_x.shape[0]
    C, D = weight.shape
    x_t = q_x.reshape(B, D).T                  # [D, B]: batch on the lane axis
    y_sm = q_y.astype(jnp.int32).reshape(B)    # labels -> SMEM
    b_col = bias.reshape(C, 1)                 # [C, 1]: broadcast over lanes

    cost = pl.CostEstimate(
        flops=2 * B * D * C,
        transcendentals=B * (C + 1),
        bytes_accessed=4 * (B * D + C * D + C + 2 * B + 1),
    )

    loss, pred = pl.pallas_call(
        _debug_model_kernel,
        out_shape=(
            jax.ShapeDtypeStruct((1, 1), jnp.float32),   # loss
            jax.ShapeDtypeStruct((1, B), jnp.int32),     # pred (lane-dense)
        ),
        in_specs=[
            pl.BlockSpec(memory_space=pltpu.SMEM),   # labels (B,) int32
            pl.BlockSpec(memory_space=pltpu.VMEM),   # W      [C, D]
            pl.BlockSpec(memory_space=pltpu.VMEM),   # x^T    [D, B]
            pl.BlockSpec(memory_space=pltpu.VMEM),   # bias   [C, 1]
        ],
        out_specs=(
            pl.BlockSpec(memory_space=pltpu.VMEM),
            pl.BlockSpec(memory_space=pltpu.VMEM),
        ),
        cost_estimate=cost,
    )(y_sm, weight, x_t, b_col)

    # NOTE: at realistic B/D sizes this should switch to a B-tiled grid
    # (e.g. block (256, D) for x, weights resident) with
    # dimension_semantics=("parallel",) so it fits v7x's 64 MiB VMEM and
    # shards across its two TensorCores; pointless at B=2.
    return loss[0, 0], pred[0, :]


if __name__ == "__main__":
    # Small shapes consistent with the module: input_dim=(4, 8, 8), 10 classes.
    B = 2
    Cch, H, W = 4, 8, 8
    D = Cch * H * W          # 256 flattened features
    NUM_CLASSES = 10

    key = jax.random.PRNGKey(0)
    k_w, k_b, k_qx, k_qy, k_sx, k_sy = jax.random.split(key, 6)

    # Deterministic Linear parameters (native torch layout: weight [C, D]).
    bound = 1.0 / (D ** 0.5)
    weight = jax.random.uniform(k_w, (NUM_CLASSES, D), jnp.float32, -bound, bound)
    bias = jax.random.uniform(k_b, (NUM_CLASSES,), jnp.float32, -bound, bound)

    # Inputs (NCHW "images"; s_x/s_y unused by the forward but supplied).
    q_x = jax.random.normal(k_qx, (B, Cch, H, W), jnp.float32)
    q_y = jax.random.randint(k_qy, (B,), 0, NUM_CLASSES, jnp.int32)
    s_x = jax.random.normal(k_sx, (B, Cch, H, W), jnp.float32)
    s_y = jax.random.randint(k_sy, (B,), 0, NUM_CLASSES, jnp.int32)

    loss, pred_y = debug_model_forward(s_x, s_y, q_x, q_y, weight, bias)
    jax.block_until_ready((loss, pred_y))
    print("KERNEL_OK")
</pallas_src>

<mosaic_0001>
module attributes {stable_mosaic.version = 11 : i64} {
  func.func @_debug_model_kernel(%arg0: memref<2xi32, #tpu.memory_space<smem>>, %arg1: memref<10x256xf32, #tpu.memory_space<vmem>>, %arg2: memref<256x2xf32, #tpu.memory_space<vmem>>, %arg3: memref<10x1xf32, #tpu.memory_space<vmem>>, %arg4: memref<1x1xf32, #tpu.memory_space<vmem>>, %arg5: memref<1x2xi32, #tpu.memory_space<vmem>>) attributes {dimension_semantics = [], scalar_prefetch = 0 : i64, scratch_operands = 0 : i64, tpu.core_type = #tpu.core_type<tc>} {
    %c0 = arith.constant 0 : index
    %c0_0 = arith.constant 0 : index
    %0 = vector.load %arg1[%c0, %c0_0] : memref<10x256xf32, #tpu.memory_space<vmem>>, vector<10x256xf32>
    %1 = arith.truncf %0 : vector<10x256xf32> to vector<10x256xbf16>
    %c0_1 = arith.constant 0 : index
    %c0_2 = arith.constant 0 : index
    %2 = vector.load %arg2[%c0_1, %c0_2] : memref<256x2xf32, #tpu.memory_space<vmem>>, vector<256x2xf32>
    %3 = arith.truncf %2 : vector<256x2xf32> to vector<256x2xbf16>
    %cst = arith.constant dense<0.000000e+00> : vector<10x2xf32>
    %4 = tpu.matmul %1, %3, %cst {dimension_numbers = #tpu.dot_dimension_numbers<[1], [0], [0], [1], [0, 0, 1, 1], [], []>} : vector<10x256xbf16>, vector<256x2xbf16>, vector<10x2xf32> -> vector<10x2xf32>
    %c0_3 = arith.constant 0 : index
    %c0_4 = arith.constant 0 : index
    %5 = vector.load %arg3[%c0_3, %c0_4] : memref<10x1xf32, #tpu.memory_space<vmem>>, vector<10x1xf32>
    %6 = vector.broadcast %5 : vector<10x1xf32> to vector<10x2xf32>
    %7 = arith.addf %4, %6 : vector<10x2xf32>
    %8 = tpu.iota {dimensions = array<i32: 0>} : vector<10x2xi32>
    %cst_5 = arith.constant dense<0xFF800000> : vector<2xf32>
    %9 = vector.multi_reduction <maximumf>, %7, %cst_5 [0] : vector<10x2xf32> to vector<2xf32>
    %10 = vector.shape_cast %9 : vector<2xf32> to vector<1x2xf32>
    %11 = vector.broadcast %10 : vector<1x2xf32> to vector<10x2xf32>
    %12 = arith.cmpf oeq, %7, %11 : vector<10x2xf32>
    %c10_i32 = arith.constant 10 : i32
    %13 = vector.broadcast %c10_i32 : i32 to vector<10x2xi32>
    %14 = arith.select %12, %8, %13 : vector<10x2xi1>, vector<10x2xi32>
    %cst_6 = arith.constant dense<2147483647> : vector<2xi32>
    %15 = vector.multi_reduction <minsi>, %14, %cst_6 [0] : vector<10x2xi32> to vector<2xi32>
    %16 = vector.shape_cast %15 : vector<2xi32> to vector<1x2xi32>
    %c0_7 = arith.constant 0 : index
    %c0_8 = arith.constant 0 : index
    %17 = vector.load %arg5[%c0_7, %c0_8] : memref<1x2xi32, #tpu.memory_space<vmem>>, vector<1x2xi32>
    tpu.vector_store %arg5[%c0_7, %c0_8], %16 {strides = array<i32>} : memref<1x2xi32, #tpu.memory_space<vmem>>, vector<1x2xi32>,
    %18 = tpu.iota {dimensions = array<i32: 1>} : vector<1x2xi32>
    %c0_i32 = arith.constant 0 : i32
    %19 = vector.broadcast %c0_i32 : i32 to vector<1x2xi32>
    %c0_i32_9 = arith.constant 0 : i32
    %20 = vector.broadcast %c0_i32_9 : i32 to vector<1x2xi32>
    %21 = arith.cmpi eq, %18, %20 : vector<1x2xi32>
    %c0_10 = arith.constant 0 : index
    %22 = memref.load %arg0[%c0_10] : memref<2xi32, #tpu.memory_space<smem>>
    %23 = vector.broadcast %22 : i32 to vector<1x2xi32>
    %24 = arith.select %21, %23, %19 : vector<1x2xi1>, vector<1x2xi32>
    %c1_i32 = arith.constant 1 : i32
    %25 = vector.broadcast %c1_i32 : i32 to vector<1x2xi32>
    %26 = arith.cmpi eq, %18, %25 : vector<1x2xi32>
    %c1 = arith.constant 1 : index
    %27 = memref.load %arg0[%c1] : memref<2xi32, #tpu.memory_space<smem>>
    %28 = vector.broadcast %27 : i32 to vector<1x2xi32>
    %29 = arith.select %26, %28, %24 : vector<1x2xi1>, vector<1x2xi32>
    %30 = vector.broadcast %10 : vector<1x2xf32> to vector<10x2xf32>
    %31 = arith.subf %7, %30 : vector<10x2xf32>
    %32 = math.exp %31 : vector<10x2xf32>
    %cst_11 = arith.constant dense<0.000000e+00> : vector<2xf32>
    %33 = vector.multi_reduction <add>, %32, %cst_11 [0] : vector<10x2xf32> to vector<2xf32>
    %34 = vector.shape_cast %33 : vector<2xf32> to vector<1x2xf32>
    %35 = math.log %34 : vector<1x2xf32>
    %36 = arith.addf %35, %10 : vector<1x2xf32>
    %37 = vector.broadcast %29 : vector<1x2xi32> to vector<10x2xi32>
    %38 = arith.cmpi eq, %8, %37 : vector<10x2xi32>
    %cst_12 = arith.constant 0.000000e+00 : f32
    %39 = vector.broadcast %cst_12 : f32 to vector<10x2xf32>
    %40 = arith.select %38, %7, %39 : vector<10x2xi1>, vector<10x2xf32>
    %cst_13 = arith.constant dense<0.000000e+00> : vector<2xf32>
    %41 = vector.multi_reduction <add>, %40, %cst_13 [0] : vector<10x2xf32> to vector<2xf32>
    %42 = vector.shape_cast %41 : vector<2xf32> to vector<1x2xf32>
    %43 = arith.subf %36, %42 : vector<1x2xf32>
    %cst_14 = arith.constant dense<0.000000e+00> : vector<1xf32>
    %44 = vector.multi_reduction <add>, %43, %cst_14 [1] : vector<1x2xf32> to vector<1xf32>
    %45 = vector.shape_cast %44 : vector<1xf32> to vector<1x1xf32>
    %cst_15 = arith.constant 5.000000e-01 : f32
    %46 = vector.broadcast %cst_15 : f32 to vector<1x1xf32>
    %47 = arith.mulf %45, %46 : vector<1x1xf32>
    %c0_16 = arith.constant 0 : index
    %c0_17 = arith.constant 0 : index
    %48 = vector.load %arg4[%c0_16, %c0_17] : memref<1x1xf32, #tpu.memory_space<vmem>>, vector<1x1xf32>
    tpu.vector_store %arg4[%c0_16, %c0_17], %47 {strides = array<i32>} : memref<1x1xf32, #tpu.memory_space<vmem>>, vector<1x1xf32>,
    return
  }
}

</mosaic_0001>

<llo_original>
// kernel: tpu_custom_call.1
$region0: #{tpu_custom_call.1}
  #allocation0 [shape = 'u32[]', space=smem, size = 0x4, offset = 0x4, fixed_abs, tag = 'smem constant byte address 0x4 - core index']
  #allocation1 [shape = 'u32[144,128]{1,0:T(1,128)}', space=vmem, size = 0x12000, scoped, tag = 'internal scratch']
  %s0 = inlined_call_operand.vmem [shape: s32[2], index: 0, kind: input, shape index: {}]
  %s1 = inlined_call_operand.vmem [shape: f32[10,256], index: 1, kind: input, shape index: {}]
  %s2 = inlined_call_operand.vmem [shape: f32[256,2], index: 2, kind: input, shape index: {}]
  %s3 = inlined_call_operand.vmem [shape: f32[10,1], index: 3, kind: input, shape index: {}]
  %s4 = inlined_call_operand.hbm [shape: f32[1,1], index: 4, kind: output, shape index: {0}]
  %s5 = inlined_call_operand.hbm [shape: s32[1,2], index: 5, kind: output, shape index: {1}]
  %6 = xla_tuple %s4, %s5
  %s7 = sld [smem:[#allocation0]]
  $region38: #{tpu_custom_call.1} parent=0
    _
  %s9 = ssub.s32 1, %s7
  %s10 = scalar_select 0, %s9, %s7
  $region1: #{tpu_custom_call.1} parent=0
    #allocation2 [shape = 'u8[512]{0}', space=smem, size = 0x200, scoped, tag = 'input window, operand 0, single buffered']
    #allocation3 [shape = 's32[1]{0}', space=sflag, size = 0x4, scoped, tag = 'scoped memory for tpu_custom_call.1']
    #allocation4 [shape = 's32[1]{0}', space=sflag, size = 0x4, scoped, tag = 'scoped memory for tpu_custom_call.1']
    #allocation5 [shape = 'u8[512]{0}', space=vmem, size = 0x400, scoped, tag = 'output window, operand 0, single buffered']
    #allocation6 [shape = 'u8[512]{0}', space=vmem, size = 0x400, scoped, tag = 'output window, operand 1, single buffered']
    #allocation7 [shape = 's32[1]{0}', space=sflag, size = 0x4, scoped, tag = 'scoped memory for tpu_custom_call.1']
    %11 = vsyncpa [#allocation4], 0
    %12 = vsyncpa [#allocation3], 0
    %13 = vsyncpa [#allocation7], 0
    // Predicated region
    $region2: #{tpu_custom_call.1} parent=1 // pred_check
      _
    $region3: #{tpu_custom_call.1} parent=1 // pred_check_branch
      %15 = sbr.rel (0) target = $region5
    $region4: #{tpu_custom_call.1} parent=1 // pred_region
      %s17 = ssub.s32 16, 16
      %18 = vsyncadd [#allocation4], %s17
      %s20 = sshll.u32 %s0, 4
      %s21 = int_to_ptr.vmem [resolvable:$true] %s20
      %23 = dma.vmem_to_smem %s21, 16, [#allocation2], [#allocation4]
    $region5: #{tpu_custom_call.1} parent=1 // pred_fallthru
      _
    // Predicated region
    $region6: #{tpu_custom_call.1} parent=1 // pred_check
      _
    $region7: #{tpu_custom_call.1} parent=1 // pred_check_branch
      %25 = sbr.rel (0) target = $region9
    $region8: #{tpu_custom_call.1} parent=1 // pred_region
      _
    $region9: #{tpu_custom_call.1} parent=1 // pred_fallthru
      _
    // Predicated region
    $region10: #{tpu_custom_call.1} parent=1 // pred_check
      _
    $region11: #{tpu_custom_call.1} parent=1 // pred_check_branch
      %27 = sbr.rel (0) target = $region13
    $region12: #{tpu_custom_call.1} parent=1 // pred_region
      _
    $region13: #{tpu_custom_call.1} parent=1 // pred_fallthru
      _
    // Predicated region
    $region14: #{tpu_custom_call.1} parent=1 // pred_check
      _
    $region15: #{tpu_custom_call.1} parent=1 // pred_check_branch
      %29 = sbr.rel (0) target = $region17
    $region16: #{tpu_custom_call.1} parent=1 // pred_region
      _
    $region17: #{tpu_custom_call.1} parent=1 // pred_fallthru
      _
    // Predicated region
    $region18: #{tpu_custom_call.1} parent=1 // pred_check
      _
    $region19: #{tpu_custom_call.1} parent=1 // pred_check_branch
      %31 = sbr.rel (0) target = $region21
    $region20: #{tpu_custom_call.1} parent=1 // pred_region
      %32 = dma.done [#allocation4], 16
    $region21: #{tpu_custom_call.1} parent=1 // pred_fallthru
      _
    %33 = sfence
    %v35 = vld [vmem:[%s1] sm:$0xff]
    %v36 = vld [vmem:[%s1 + $0x8] sm:$0xff]
    %v37 = vld [vmem:[%s1 + $0x10] sm:$0x3]
    %v38 = vld [vmem:[%s1 + $0x18] sm:$0x3]
    %v39 = vpack.c.bf16 %v37, %v35
    %v40 = vpack.c.bf16 %v38, %v36
    %v41 = vld [vmem:[%s2] sm:$0xff]
    %v42 = vld [vmem:[%s2 + $0x8] sm:$0xff]
    %v43 = vld [vmem:[%s2 + $0x10] sm:$0xff]
    %v44 = vld [vmem:[%s2 + $0x18] sm:$0xff]
    %v45 = vld [vmem:[%s2 + $0x20] sm:$0xff]
    %v46 = vld [vmem:[%s2 + $0x28] sm:$0xff]
    %v47 = vld [vmem:[%s2 + $0x30] sm:$0xff]
    %v48 = vld [vmem:[%s2 + $0x38] sm:$0xff]
    %v49 = vld [vmem:[%s2 + $0x40] sm:$0xff]
    %v50 = vld [vmem:[%s2 + $0x48] sm:$0xff]
    %v51 = vld [vmem:[%s2 + $0x50] sm:$0xff]
    %v52 = vld [vmem:[%s2 + $0x58] sm:$0xff]
    %v53 = vld [vmem:[%s2 + $0x60] sm:$0xff]
    %v54 = vld [vmem:[%s2 + $0x68] sm:$0xff]
    %v55 = vld [vmem:[%s2 + $0x70] sm:$0xff]
    %v56 = vld [vmem:[%s2 + $0x78] sm:$0xff]
    %v57 = vld [vmem:[%s2 + $0x80] sm:$0xff]
    %v58 = vld [vmem:[%s2 + $0x88] sm:$0xff]
    %v59 = vld [vmem:[%s2 + $0x90] sm:$0xff]
    %v60 = vld [vmem:[%s2 + $0x98] sm:$0xff]
    %v61 = vld [vmem:[%s2 + $0xa0] sm:$0xff]
    %v62 = vld [vmem:[%s2 + $0xa8] sm:$0xff]
    %v63 = vld [vmem:[%s2 + $0xb0] sm:$0xff]
    %v64 = vld [vmem:[%s2 + $0xb8] sm:$0xff]
    %v65 = vld [vmem:[%s2 + $0xc0] sm:$0xff]
    %v66 = vld [vmem:[%s2 + $0xc8] sm:$0xff]
    %v67 = vld [vmem:[%s2 + $0xd0] sm:$0xff]
    %v68 = vld [vmem:[%s2 + $0xd8] sm:$0xff]
    %v69 = vld [vmem:[%s2 + $0xe0] sm:$0xff]
    %v70 = vld [vmem:[%s2 + $0xe8] sm:$0xff]
    %v71 = vld [vmem:[%s2 + $0xf0] sm:$0xff]
    %v72 = vld [vmem:[%s2 + $0xf8] sm:$0xff]
    %v73 = vpack.c.bf16 %v42, %v41
    %v74 = vpack.c.bf16 %v44, %v43
    %v75 = vpack.c.bf16 %v46, %v45
    %v76 = vpack.c.bf16 %v48, %v47
    %v77 = vpack.c.bf16 %v50, %v49
    %v78 = vpack.c.bf16 %v52, %v51
    %v79 = vpack.c.bf16 %v54, %v53
    %v80 = vpack.c.bf16 %v56, %v55
    %v81 = vpack.c.bf16 %v58, %v57
    %v82 = vpack.c.bf16 %v60, %v59
    %v83 = vpack.c.bf16 %v62, %v61
    %v84 = vpack.c.bf16 %v64, %v63
    %v85 = vpack.c.bf16 %v66, %v65
    %v86 = vpack.c.bf16 %v68, %v67
    %v87 = vpack.c.bf16 %v70, %v69
    %v88 = vpack.c.bf16 %v72, %v71
    %v89 = vld [vmem:[%s3] sm:$0xff]
    %v90 = vld [vmem:[%s3 + $0x8] sm:$0x3]
    %92 = vset.pattern.permute.xlu0 0
    %93 = vperm.xlu0 %92, %v89
    %v94 = vpop.permute.xlu0 %93
    %97 = vset.pattern.permute.xlu0 0
    %98 = vperm.xlu0 %97, %v90
    %v99 = vpop.permute.xlu0 %98
    %101 = vmatprep.subr.bf16.mxu0 0
    %102 = vmatpush1.bf16.msra.mxu0 %v80
    %103 = vmatprep.subr.bf16.mxu0 0
    %104 = vmatpush1.bf16.msra.mxu0 %v79
    %105 = vmatprep.subr.bf16.mxu0 0
    %106 = vmatpush1.bf16.msra.mxu0 %v78
    %107 = vmatprep.subr.bf16.mxu0 0
    %108 = vmatpush1.bf16.msra.mxu0 %v77
    %109 = vmatprep.subr.bf16.mxu0 0
    %110 = vmatpush1.bf16.msra.mxu0 %v76
    %111 = vmatprep.subr.bf16.mxu0 0
    %112 = vmatpush1.bf16.msra.mxu0 %v75
    %113 = vmatprep.subr.bf16.mxu0 0
    %114 = vmatpush1.bf16.msra.mxu0 %v74
    %115 = vmatprep.subr.bf16.mxu0 0
    %116 = vmatpush1.bf16.msra.mxu0 %v73
    %117 = vmatprep.subr.bf16.mxu0 0
    %118 = vmatpush2.bf16.msra.mxu0 %v88
    %119 = vmatprep.subr.bf16.mxu0 0
    %120 = vmatpush2.bf16.msra.mxu0 %v87
    %121 = vmatprep.subr.bf16.mxu0 0
    %122 = vmatpush2.bf16.msra.mxu0 %v86
    %123 = vmatprep.subr.bf16.mxu0 0
    %124 = vmatpush2.bf16.msra.mxu0 %v85
    %125 = vmatprep.subr.bf16.mxu0 0
    %126 = vmatpush2.bf16.msra.mxu0 %v84
    %127 = vmatprep.subr.bf16.mxu0 0
    %128 = vmatpush2.bf16.msra.mxu0 %v83
    %129 = vmatprep.subr.bf16.mxu0 0
    %130 = vmatpush2.bf16.msra.mxu0 %v82
    %131 = vmatprep.subr.bf16.mxu0 0
    %132 = vmatpush2.bf16.msra.mxu0 %v81
    %133 = vmatprep.mubr.bf16.mxu0 %v40
    %134 = vmatmul.mubr.bf16.gmra.mxu0 %v39
    %v135 = vpop.f32.mrf.mxu0
    %v136 = vadd.f32 %v94, %v135
    %v137 = vpop.f32.mrf.mxu0
    %v138 = vpop.f32.mrf.mxu0
    %v139 = vadd.f32 %v99, %v138
    %v140 = vpop.f32.mrf.mxu0
    %141 = vdwg.mxu0
    %v142 = vlaneseq
    %v143 = vshrl.u32 %v142, 7
    %v144 = vadd.s32 %v143, 8
    %vm145 = vcmask 15360
    %v146 = vsel %vm145, %v136, -inf
    %vm147 = vcmask 9216
    %v148 = vsel %vm147, %v139, -inf
    %v149 = vmax.f32 %v146, %v148
    %v150 = vrot.slane %v149, 4
    %v151 = vmax.f32 %v149, %v150
    %v152 = vrot.slane %v151, 2
    %v153 = vmax.f32 %v151, %v152
    %v154 = vrot.slane %v153, 1
    %v155 = vmax.f32 %v153, %v154
    %vm156 = vcmp.eq.f32.partialorder %v136, %v155
    %vm157 = vcmp.eq.f32.partialorder %v139, %v155
    %v158 = vsel %vm156, %v143, 10
    %v159 = vsel %vm157, %v144, 10
    %v160 = vsel %vm145, %v158, 2147483647
    %v161 = vsel %vm147, %v159, 2147483647
    %vm162 = vcmp.lt.s32.totalorder %v160, %v161
    %v163 = vsel %vm162, %v160, %v161
    %v164 = vrot.slane %v163, 4
    %vm165 = vcmp.lt.s32.totalorder %v163, %v164
    %v166 = vsel %vm165, %v163, %v164
    %v167 = vrot.slane %v166, 2
    %vm168 = vcmp.lt.s32.totalorder %v166, %v167
    %v169 = vsel %vm168, %v166, %v167
    %v170 = vrot.slane %v169, 1
    %vm171 = vcmp.lt.s32.totalorder %v169, %v170
    %v172 = vsel %vm171, %v169, %v170
    %vm173 = vcmask 8192
    %174 = vst.msk [vmem:[#allocation6] sm:$0x1] %vm173, %v172
    %v175 = vlaneseq
    %v176 = vand.u32 %v175, 127
    %vm177 = vcmp.eq.s32.totalorder %v176, 0
    %s178 = sld [smem:[#allocation2]]
    %v179 = vstv %s178
    %v180 = vsel %vm177, %v179, 0
    %vm181 = vcmp.eq.s32.totalorder %v176, 1
    %s182 = sld [smem:[#allocation2 + $0x1]]
    %v183 = vstv %s182
    %v184 = vsel %vm181, %v183, %v180
    %v185 = vsub.f32 %v136, %v155
    %v186 = vsub.f32 %v139, %v155
    %v187 = vmul.f32 %v185, 1.442695
    %v188 = vpow.pop %v187
    %v189 = vmul.f32 %v186, 1.442695
    %v190 = vpow.pop %v189
    %v191 = vsel %vm145, %v188, 0.0
    %v192 = vsel %vm147, %v190, 0.0
    %v193 = vadd.f32 %v191, %v192
    %v194 = vrot.slane %v193, 4
    %v195 = vadd.f32 %v193, %v194
    %v196 = vrot.slane %v195, 2
    %v197 = vadd.f32 %v195, %v196
    %v198 = vrot.slane %v197, 1
    %v199 = vadd.f32 %v197, %v198
    %v200 = vlog2.pop %v199
    %v201 = vmul.f32 %v200, 0.6931472
    %v202 = vadd.f32 %v201, %v155
    %vm203 = vcmp.eq.s32.totalorder %v143, %v184
    %vm204 = vcmp.eq.s32.totalorder %v144, %v184
    %v205 = vsel %vm203, %v136, 0.0
    %v206 = vsel %vm204, %v139, 0.0
    %v207 = vsel %vm145, %v205, 0.0
    %v208 = vsel %vm147, %v206, 0.0
    %v209 = vadd.f32 %v207, %v208
    %v210 = vrot.slane %v209, 4
    %v211 = vadd.f32 %v209, %v210
    %v212 = vrot.slane %v211, 2
    %v213 = vadd.f32 %v211, %v212
    %v214 = vrot.slane %v213, 1
    %v215 = vadd.f32 %v213, %v214
    %v216 = vsub.f32 %v202, %v215
    %v217 = vsel %vm145, %v216, 0.0
    %218 = vadd.xlane.f32.xlu0 %v217
    %v219 = vpop.xlane.xlu0 %218
    %v220 = vmul.f32 %v219, 0.5
    %vm221 = vcmask 0
    %222 = vst.msk [vmem:[#allocation5] sm:$0x1] %vm221, %v220
    // Predicated region
    $region22: #{tpu_custom_call.1} parent=1 // pred_check
      _
    $region23: #{tpu_custom_call.1} parent=1 // pred_check_branch
      %224 = sbr.rel (0) target = $region25
    $region24: #{tpu_custom_call.1} parent=1 // pred_region
      %s226 = ssub.s32 16, 16
      %227 = vsyncadd [#allocation3], %s226
      %s229 = sshll.u32 [#allocation5], 4
      %s230 = int_to_ptr.vmem [resolvable:$true] %s229
      %232 = dma.vmem_to_hbm [thread:$0]  %s230, 16, %s4, [#allocation3]
    $region25: #{tpu_custom_call.1} parent=1 // pred_fallthru
      _
    // Predicated region
    $region26: #{tpu_custom_call.1} parent=1 // pred_check
      _
    $region27: #{tpu_custom_call.1} parent=1 // pred_check_branch
      %234 = sbr.rel (0) target = $region29
    $region28: #{tpu_custom_call.1} parent=1 // pred_region
      %s236 = ssub.s32 16, 16
      %237 = vsyncadd [#allocation7], %s236
      %s239 = sshll.u32 [#allocation6], 4
      %s240 = int_to_ptr.vmem [resolvable:$true] %s239
      %242 = dma.vmem_to_hbm [thread:$0]  %s240, 16, %s5, [#allocation7]
    $region29: #{tpu_custom_call.1} parent=1 // pred_fallthru
      _
    // Predicated region
    $region30: #{tpu_custom_call.1} parent=1 // pred_check
      _
    $region31: #{tpu_custom_call.1} parent=1 // pred_check_branch
      %244 = sbr.rel (0) target = $region33
    $region32: #{tpu_custom_call.1} parent=1 // pred_region
      %245 = dma.done [#allocation3], 16
    $region33: #{tpu_custom_call.1} parent=1 // pred_fallthru
      _
    // Predicated region
    $region34: #{tpu_custom_call.1} parent=1 // pred_check
      _
    $region35: #{tpu_custom_call.1} parent=1 // pred_check_branch
      %247 = sbr.rel (0) target = $region37
    $region36: #{tpu_custom_call.1} parent=1 // pred_region
      %248 = dma.done [#allocation7], 16
    $region37: #{tpu_custom_call.1} parent=1 // pred_fallthru
      _
    %249 = vsyncpa [#allocation3], 1
    %250 = vsyncpa [#allocation7], 1
    %251 = vsyncpa [#allocation4], 1

</llo_original>
